<compile_context>
chip_gen: v7x
topology: tpu7x:2x2x1
jax: 0.10.0
libtpu: 0.0.40
codegen_flags: <defaults>
</compile_context>

<pallas_src>
import functools

import jax
import jax.numpy as jnp
from jax.experimental import pallas as pl
from jax.experimental.pallas import tpu as pltpu

LANES = 128


def _nonsmooth_sigmoid_kernel(x_ref, o_ref, *, support, coeff):
    x = x_ref[...]
    dt = x.dtype
    s = jnp.asarray(support, dtype=dt)
    k = jnp.asarray(coeff, dtype=dt)
    one = jnp.asarray(1.0, dtype=dt)
    half = jnp.asarray(0.5, dtype=dt)
    inv_2s = jnp.asarray(1.0 / (2.0 * support), dtype=dt)  # trace-time constant

    out_a = k * (x - s) + one      # x >  support
    out_b = k * (x + s)            # x < -support
    out_c = x * inv_2s + half      # -support <= x <= support

    o_ref[...] = jnp.where(x > s, out_a, jnp.where(x < -s, out_b, out_c))


def nonsmooth_sigmoid(x, support=2.0, coeff=0.001, *, max_block_bytes=2 * 1024 * 1024):
    """Elementwise piecewise-linear sigmoid via a Pallas TPU kernel."""
    orig_shape = x.shape
    dtype = x.dtype
    n = x.size
    itemsize = jnp.dtype(dtype).itemsize

    # Minimum padding granularity: one native (sublane x lane) tile
    # (8 rows for 32-bit, 16 rows for 16-bit, ... packed along sublanes).
    sublane_pack = max(1, 4 // itemsize)
    row_granule = 8 * sublane_pack
    elem_granule = row_granule * LANES

    x_flat = x.reshape(-1)
    n_pad = ((n + elem_granule - 1) // elem_granule) * elem_granule
    padded = n_pad != n
    if padded:
        x_flat = jnp.pad(x_flat, (0, n_pad - n))
    rows = n_pad // LANES
    x2d = x_flat.reshape(rows, LANES)

    # ~2 MiB blocks: large enough to amortize per-step overhead and reach the
    # HBM roofline, small enough for the default scoped-VMEM budget on all chips.
    max_tile_rows = max_block_bytes // (LANES * itemsize)
    max_tile_rows = max(row_granule, (max_tile_rows // row_granule) * row_granule)
    tile_rows = min(rows, max_tile_rows)
    grid = (pl.cdiv(rows, tile_rows),)

    kernel = functools.partial(
        _nonsmooth_sigmoid_kernel, support=float(support), coeff=float(coeff))

    out2d = pl.pallas_call(
        kernel,
        out_shape=jax.ShapeDtypeStruct((rows, LANES), dtype),
        grid_spec=pltpu.PrefetchScalarGridSpec(
            num_scalar_prefetch=0,
            grid=grid,
            in_specs=[pl.BlockSpec((tile_rows, LANES), lambda i: (i, 0))],
            out_specs=pl.BlockSpec((tile_rows, LANES), lambda i: (i, 0)),
        ),
        compiler_params=pltpu.CompilerParams(
            dimension_semantics=("parallel",)),
        cost_estimate=pl.CostEstimate(
            flops=5 * n_pad,
            transcendentals=0,
            bytes_accessed=2 * n_pad * itemsize),
    )(x2d)

    out_flat = out2d.reshape(-1)
    if padded:
        out_flat = out_flat[:n]
    return out_flat.reshape(orig_shape)


def _reference(x, support=2.0, coeff=0.001):
    a = (x > support).astype(x.dtype)
    b = (x < -support).astype(x.dtype)
    c = 1.0 - jnp.clip(a + b, 0.0, 1.0)
    return (a * (coeff * (x - support) + 1.0)
            + b * (coeff * (x + support))
            + c * (x / 2.0 / support + 0.5))


if __name__ == "__main__":
    key = jax.random.PRNGKey(0)

    # Primary test: NCHW conv-style tensor (size already lane-aligned -> no pad/slice).
    x = jax.random.normal(key, (2, 4, 16, 16), dtype=jnp.float32) * 4.0
    out = jax.block_until_ready(nonsmooth_sigmoid(x, support=2.0, coeff=0.001))
    ref = _reference(x, support=2.0, coeff=0.001)
    assert out.shape == x.shape and out.dtype == x.dtype
    assert jnp.allclose(out, ref, atol=1e-6), "mismatch vs reference (aligned path)"

    # Ragged size -> exercises the minimal 8x128 pad + slice path.
    k1, k2 = jax.random.split(key)
    x_odd = jax.random.normal(k1, (3, 5, 7), dtype=jnp.float32) * 4.0
    out_odd = jax.block_until_ready(nonsmooth_sigmoid(x_odd, support=2.0, coeff=0.001))
    assert jnp.allclose(out_odd, _reference(x_odd), atol=1e-6), "mismatch (padded path)"

    # Small max_block_bytes -> exercises the multi-block grid path at small size.
    x_big = jax.random.normal(k2, (2, 4, 64, 64), dtype=jnp.float32) * 4.0
    out_big = jax.block_until_ready(
        nonsmooth_sigmoid(x_big, support=2.0, coeff=0.001, max_block_bytes=64 * 1024))
    assert jnp.allclose(out_big, _reference(x_big), atol=1e-6), "mismatch (multi-block path)"

    print("KERNEL_OK")
</pallas_src>

<mosaic_0001>
module attributes {stable_mosaic.version = 11 : i64} {
  func.func @_nonsmooth_sigmoid_kernel(%arg0: i32, %arg1: memref<16x128xf32, #tpu.memory_space<vmem>>, %arg2: memref<16x128xf32, #tpu.memory_space<vmem>>) attributes {dimension_semantics = [#tpu.dimension_semantics<parallel>], iteration_bounds = array<i64: 1>, scalar_prefetch = 0 : i64, scratch_operands = 0 : i64, tpu.core_type = #tpu.core_type<tc>, window_params = [{transform_indices = @transform_0, window_bounds = array<i64: 16, 128>}, {transform_indices = @transform_1, window_bounds = array<i64: 16, 128>}]} {
    %c0 = arith.constant 0 : index
    %c0_0 = arith.constant 0 : index
    %0 = vector.load %arg1[%c0, %c0_0] : memref<16x128xf32, #tpu.memory_space<vmem>>, vector<16x128xf32>
    %cst = arith.constant 2.000000e+00 : f32
    %1 = vector.broadcast %cst : f32 to vector<16x128xf32>
    %2 = arith.subf %0, %1 : vector<16x128xf32>
    %cst_1 = arith.constant 1.000000e-03 : f32
    %3 = vector.broadcast %cst_1 : f32 to vector<16x128xf32>
    %4 = arith.mulf %3, %2 : vector<16x128xf32>
    %cst_2 = arith.constant 1.000000e+00 : f32
    %5 = vector.broadcast %cst_2 : f32 to vector<16x128xf32>
    %6 = arith.addf %4, %5 : vector<16x128xf32>
    %cst_3 = arith.constant 2.000000e+00 : f32
    %7 = vector.broadcast %cst_3 : f32 to vector<16x128xf32>
    %8 = arith.addf %0, %7 : vector<16x128xf32>
    %cst_4 = arith.constant 1.000000e-03 : f32
    %9 = vector.broadcast %cst_4 : f32 to vector<16x128xf32>
    %10 = arith.mulf %9, %8 : vector<16x128xf32>
    %cst_5 = arith.constant 2.500000e-01 : f32
    %11 = vector.broadcast %cst_5 : f32 to vector<16x128xf32>
    %12 = arith.mulf %0, %11 : vector<16x128xf32>
    %cst_6 = arith.constant 5.000000e-01 : f32
    %13 = vector.broadcast %cst_6 : f32 to vector<16x128xf32>
    %14 = arith.addf %12, %13 : vector<16x128xf32>
    %cst_7 = arith.constant 2.000000e+00 : f32
    %15 = vector.broadcast %cst_7 : f32 to vector<16x128xf32>
    %16 = arith.cmpf ogt, %0, %15 : vector<16x128xf32>
    %cst_8 = arith.constant 0.000000e+00 : f32
    %cst_9 = arith.constant 2.000000e+00 : f32
    %17 = arith.subf %cst_8, %cst_9 : f32
    %18 = vector.broadcast %17 : f32 to vector<16x128xf32>
    %19 = arith.cmpf olt, %0, %18 : vector<16x128xf32>
    %20 = arith.select %19, %10, %14 : vector<16x128xi1>, vector<16x128xf32>
    %21 = arith.select %16, %6, %20 : vector<16x128xi1>, vector<16x128xf32>
    %c0_10 = arith.constant 0 : index
    %c0_11 = arith.constant 0 : index
    %22 = vector.load %arg2[%c0_10, %c0_11] : memref<16x128xf32, #tpu.memory_space<vmem>>, vector<16x128xf32>
    tpu.vector_store %arg2[%c0_10, %c0_11], %21 {strides = array<i32>} : memref<16x128xf32, #tpu.memory_space<vmem>>, vector<16x128xf32>,
    return
  }
  func.func @transform_0(%arg0: i32) -> (i32, i32) {
    %c0_i32 = arith.constant 0 : i32
    %c0_i32_0 = arith.constant 0 : i32
    return %arg0, %c0_i32 : i32, i32
  }
  func.func @transform_1(%arg0: i32) -> (i32, i32) {
    %c0_i32 = arith.constant 0 : i32
    %c0_i32_0 = arith.constant 0 : i32
    return %arg0, %c0_i32 : i32, i32
  }
}

</mosaic_0001>

<llo_original>
// kernel: tpu_custom_call.1
$region0: #{tpu_custom_call.1}
  #allocation0 [shape = 'u32[]', space=smem, size = 0x4, offset = 0x4, fixed_abs, tag = 'smem constant byte address 0x4 - core index']
  #allocation1 [shape = 'u32[144,128]{1,0:T(1,128)}', space=vmem, size = 0x12000, scoped, tag = 'internal scratch']
  %s0 = inlined_call_operand.hbm [shape: f32[16,128], index: 0, kind: input, shape index: {}]
  %s1 = inlined_call_operand.hbm [shape: f32[16,128], index: 1, kind: output, shape index: {}]
  %s2 = sld [smem:[#allocation0]]
  $region18: #{tpu_custom_call.1} parent=0
    _
  %s4 = ssub.s32 1, %s2
  %s5 = scalar_select 0, %s4, %s2
  $region1: #{tpu_custom_call.1} parent=0
    #allocation2 [shape = 'u8[8192]{0}', space=vmem, size = 0x2000, scoped, tag = 'input window, operand 0, single buffered']
    #allocation3 [shape = 's32[1]{0}', space=sflag, size = 0x4, scoped, tag = 'scoped memory for tpu_custom_call.1']
    #allocation4 [shape = 's32[1]{0}', space=sflag, size = 0x4, scoped, tag = 'scoped memory for tpu_custom_call.1']
    #allocation5 [shape = 'u8[8192]{0}', space=vmem, size = 0x2000, scoped, tag = 'output window, operand 0, single buffered']
    %6 = vsyncpa [#allocation3], 0
    %7 = vsyncpa [#allocation4], 0
    // Predicated region
    $region2: #{tpu_custom_call.1} parent=1 // pred_check
      _
    $region3: #{tpu_custom_call.1} parent=1 // pred_check_branch
      %9 = sbr.rel (0) target = $region5
    $region4: #{tpu_custom_call.1} parent=1 // pred_region
      %s11 = ssub.s32 256, 256
      %12 = vsyncadd [#allocation3], %s11
      %s13 = sshll.u32 [#allocation2], 4
      %s14 = int_to_ptr.vmem [resolvable:$true] %s13
      %19 = dma.hbm_to_vmem [thread:$0]  %s0, 256, %s14, [#allocation3], 128, 128, 8
    $region5: #{tpu_custom_call.1} parent=1 // pred_fallthru
      _
    // Predicated region
    $region6: #{tpu_custom_call.1} parent=1 // pred_check
      _
    $region7: #{tpu_custom_call.1} parent=1 // pred_check_branch
      %21 = sbr.rel (0) target = $region9
    $region8: #{tpu_custom_call.1} parent=1 // pred_region
      %22 = dma.done [#allocation3], 256
    $region9: #{tpu_custom_call.1} parent=1 // pred_fallthru
      _
    %v23 = vld [vmem:[#allocation2] sm:$0xff]
    %v24 = vld [vmem:[#allocation2 + $0x8] sm:$0xff]
    %v25 = vsub.f32 %v23, 2.0
    %v26 = vsub.f32 %v24, 2.0
    %v27 = vmul.f32 %v25, 0.001
    %v28 = vmul.f32 %v26, 0.001
    %v29 = vadd.f32 %v27, 1.0
    %v30 = vadd.f32 %v28, 1.0
    %v31 = vadd.f32 %v23, 2.0
    %v32 = vadd.f32 %v24, 2.0
    %v33 = vmul.f32 %v31, 0.001
    %v34 = vmul.f32 %v32, 0.001
    %v35 = vmul.f32 %v23, 0.25
    %v36 = vmul.f32 %v24, 0.25
    %v37 = vadd.f32 %v35, 0.5
    %v38 = vadd.f32 %v36, 0.5
    %vm39 = vcmp.gt.f32.partialorder %v23, 2.0
    %vm40 = vcmp.gt.f32.partialorder %v24, 2.0
    %vm41 = vcmp.lt.f32.partialorder %v23, -2.0
    %vm42 = vcmp.lt.f32.partialorder %v24, -2.0
    %v43 = vsel %vm41, %v33, %v37
    %v44 = vsel %vm42, %v34, %v38
    %v45 = vsel %vm39, %v29, %v43
    %v46 = vsel %vm40, %v30, %v44
    %47 = vst [vmem:[#allocation5] sm:$0xff] %v45
    %48 = vst [vmem:[#allocation5 + $0x8] sm:$0xff] %v46
    // Predicated region
    $region10: #{tpu_custom_call.1} parent=1 // pred_check
      _
    $region11: #{tpu_custom_call.1} parent=1 // pred_check_branch
      %50 = sbr.rel (0) target = $region13
    $region12: #{tpu_custom_call.1} parent=1 // pred_region
      %s52 = ssub.s32 256, 256
      %53 = vsyncadd [#allocation4], %s52
      %s54 = sshll.u32 [#allocation5], 4
      %s55 = int_to_ptr.vmem [resolvable:$true] %s54
      %60 = dma.vmem_to_hbm [thread:$0]  %s55, 256, %s1, [#allocation4], 128, 128, 8
    $region13: #{tpu_custom_call.1} parent=1 // pred_fallthru
      _
    // Predicated region
    $region14: #{tpu_custom_call.1} parent=1 // pred_check
      _
    $region15: #{tpu_custom_call.1} parent=1 // pred_check_branch
      %62 = sbr.rel (0) target = $region17
    $region16: #{tpu_custom_call.1} parent=1 // pred_region
      %63 = dma.done [#allocation4], 256
    $region17: #{tpu_custom_call.1} parent=1 // pred_fallthru
      _
    %64 = vsyncpa [#allocation3], 1
    %65 = vsyncpa [#allocation4], 1

</llo_original>
